<compile_context>
chip_gen: v7x
topology: tpu7x:2x2x1
jax: 0.10.0
libtpu: 0.0.40
codegen_flags: <defaults>
</compile_context>

<pallas_src>
import jax
import jax.numpy as jnp
from jax.experimental import pallas as pl
from jax.experimental.pallas import tpu as pltpu


# ----------------------------- Pallas kernel --------------------------------
def _predictor_kernel(x1_ref, x2_ref, oth_ref, p_ref, o_ref):
    x1 = x1_ref[...].astype(jnp.float32)                 # (tb, D)
    x2 = x2_ref[...].astype(jnp.float32)                 # (tb, D)
    oth = oth_ref[...].astype(jnp.float32)               # (tb, 4)
    P = p_ref[...]                                       # (16, 4) packed params

    # get_r2: center rows, squared Pearson correlation per row.
    p1 = x1 - jnp.mean(x1, axis=1, keepdims=True)
    p2 = x2 - jnp.mean(x2, axis=1, keepdims=True)
    n1_sq = jnp.sum(p1 * p1, axis=1, keepdims=True)      # (tb, 1)
    n2_sq = jnp.sum(p2 * p2, axis=1, keepdims=True)      # (tb, 1)
    dot = jnp.sum(p1 * p2, axis=1, keepdims=True)        # (tb, 1)
    # (dot / (sqrt(n1_sq)*sqrt(n2_sq)))^2  ==  dot^2 * 1/(n1_sq*n2_sq)
    r2 = (dot * dot) * pl.reciprocal(n1_sq * n2_sq)      # (tb, 1)

    # Unpack the parameter slab (all slices start at lane 0).
    w1_r2 = P[0:1, :]          # (1, 4)  W1 row for the r2 feature
    w1_oth = P[1:5, :]         # (4, 4)  W1 rows for input_others
    b1 = P[5:6, :]             # (1, 4)
    w2p = P[6:10, :]           # (4, 4)  W2, zero-padded in cols 2:4
    b2p = P[10:11, :]          # (1, 4)  b2, zero-padded in cols 2:4

    # Layer 1 (concat-free): concat([r2, others]) @ W1 + b1, then ReLU.
    h = (r2 * w1_r2
         + jnp.dot(oth, w1_oth, preferred_element_type=jnp.float32)
         + b1)
    h = jnp.maximum(h, 0.0)

    # Layer 2 (padded columns 2:4 stay zero and are discarded).
    out4 = jnp.dot(h, w2p, preferred_element_type=jnp.float32) + b2p
    o_ref[...] = out4[:, 0:2].astype(o_ref.dtype)


# ----------------------------- wrapper ---------------------------------------
def _choose_tb(B, D, itemsize):
    """Pick the batch tile: biggest that fits a v7x-safe VMEM budget."""
    sub = 8 if itemsize >= 4 else 16          # sublane multiple (f32 vs bf16)
    # Dominant VMEM traffic: 2 inputs x 2 pipeline buffers x (tb, D) tiles.
    budget = 40 * 1024 * 1024                 # keeps double-buffering on 64 MiB v7x
    per_row = 2 * 2 * D * itemsize
    tb = max(budget // max(per_row, 1), sub)
    tb = min(tb, 1024)                        # per-step overhead already amortized
    if B >= 2 * sub:                          # keep >= 2 grid steps (v7x megacore)
        tb = min(tb, -(-B // 2))
    tb = min(tb, B)
    tb = max(sub, (tb // sub) * sub)
    return tb


def predictor_forward(params, input1, input2, input_others):
    """Forward pass of `predictor`. input1/input2: (B, D); input_others: (B, 4)."""
    B, D = input1.shape
    assert input2.shape == (B, D)
    assert input_others.shape == (B, 4)

    itemsize = jnp.dtype(input1.dtype).itemsize
    tb = _choose_tb(B, D, itemsize)
    grid = (pl.cdiv(B, tb),)
    # TODO(synk): for very wide D where a (tb, D) pair of tiles cannot fit the
    # VMEM budget, add a second "arbitrary" grid axis over D and accumulate raw
    # moments in VMEM scratch, finalizing r2 + MLP under pl.when(k == last).

    # Pack all (tiny) MLP parameters into one lane-aligned f32 slab.
    w1 = jnp.asarray(params["w1"], jnp.float32)          # (5, 4), stored (in, out)
    b1 = jnp.asarray(params["b1"], jnp.float32)          # (4,)
    w2 = jnp.asarray(params["w2"], jnp.float32)          # (4, 2)
    b2 = jnp.asarray(params["b2"], jnp.float32)          # (2,)
    pslab = jnp.zeros((16, 4), jnp.float32)
    pslab = pslab.at[0:5, :].set(w1)
    pslab = pslab.at[5, :].set(b1)
    pslab = pslab.at[6:10, 0:2].set(w2)
    pslab = pslab.at[10, 0:2].set(b2)

    cost = pl.CostEstimate(
        flops=int(10 * B * D + 60 * B),
        transcendentals=0,
        bytes_accessed=int((2 * B * D + 4 * B) * itemsize + 2 * B * 4
                           + pslab.size * 4),
    )

    return pl.pallas_call(
        _predictor_kernel,
        out_shape=jax.ShapeDtypeStruct((B, 2), jnp.float32),
        grid_spec=pltpu.PrefetchScalarGridSpec(
            num_scalar_prefetch=0,
            grid=grid,
            in_specs=[
                pl.BlockSpec((tb, D), lambda i: (i, 0)),     # input1 tile
                pl.BlockSpec((tb, D), lambda i: (i, 0)),     # input2 tile
                pl.BlockSpec((tb, 4), lambda i: (i, 0)),     # input_others tile
                pl.BlockSpec((16, 4), lambda i: (0, 0)),     # packed params
            ],
            out_specs=pl.BlockSpec((tb, 2), lambda i: (i, 0)),
        ),
        compiler_params=pltpu.CompilerParams(
            dimension_semantics=("parallel",),
            vmem_limit_bytes=64 * 1024 * 1024,
        ),
        cost_estimate=cost,
    )(input1, input2, input_others, pslab)


def init_params(key):
    k1, k2, k3, k4 = jax.random.split(key, 4)
    return {
        # nn.Linear(5, 4) stored as (in, out)
        "w1": jax.random.normal(k1, (5, 4), jnp.float32) * 0.3,
        "b1": jax.random.normal(k2, (4,), jnp.float32) * 0.1,
        # nn.Linear(4, 2)
        "w2": jax.random.normal(k3, (4, 2), jnp.float32) * 0.3,
        "b2": jax.random.normal(k4, (2,), jnp.float32) * 0.1,
    }


# ----------------------------- reference + test -----------------------------
def _reference_forward(params, input1, input2, input_others):
    p1 = input1 - jnp.mean(input1, axis=1, keepdims=True)
    p2 = input2 - jnp.mean(input2, axis=1, keepdims=True)
    n1 = jnp.sqrt(jnp.sum(p1 * p1, axis=1))
    n2 = jnp.sqrt(jnp.sum(p2 * p2, axis=1))
    dot = jnp.sum(p1 * p2, axis=1)
    r2 = ((dot / (n1 * n2)) ** 2)[:, None]
    feat = jnp.concatenate([r2, input_others], axis=1)
    h = jnp.maximum(feat @ params["w1"] + params["b1"], 0.0)
    return h @ params["w2"] + params["b2"]


if __name__ == "__main__":
    key = jax.random.PRNGKey(0)
    k1, k2, k3, kp = jax.random.split(key, 4)

    # Odd batch exercises the padding-free partial last block.
    B, D = 13, 16
    input1 = jax.random.normal(k1, (B, D), jnp.float32)
    input2 = jax.random.normal(k2, (B, D), jnp.float32)
    input_others = jax.random.normal(k3, (B, 4), jnp.float32)
    params = init_params(kp)

    out = jax.block_until_ready(
        predictor_forward(params, input1, input2, input_others)
    )
    assert out.shape == (B, 2), out.shape

    ref = _reference_forward(params, input1, input2, input_others)
    max_err = float(jnp.max(jnp.abs(out - ref)))
    assert jnp.allclose(out, ref, atol=1e-4, rtol=1e-4), max_err

    print("KERNEL_OK")
</pallas_src>

<mosaic_0001>
module attributes {stable_mosaic.version = 11 : i64} {
  func.func @_predictor_kernel(%arg0: i32, %arg1: memref<8x16xf32, #tpu.memory_space<vmem>>, %arg2: memref<8x16xf32, #tpu.memory_space<vmem>>, %arg3: memref<8x4xf32, #tpu.memory_space<vmem>>, %arg4: memref<16x4xf32, #tpu.memory_space<vmem>>, %arg5: memref<8x2xf32, #tpu.memory_space<vmem>>) attributes {dimension_semantics = [#tpu.dimension_semantics<parallel>], iteration_bounds = array<i64: 2>, scalar_prefetch = 0 : i64, scratch_operands = 0 : i64, tpu.core_type = #tpu.core_type<tc>, window_params = [{transform_indices = @transform_0, window_bounds = array<i64: 8, 16>}, {transform_indices = @transform_1, window_bounds = array<i64: 8, 16>}, {transform_indices = @transform_2, window_bounds = array<i64: 8, 4>}, {pipeline_mode = #tpu.pipeline_mode<synchronous>, transform_indices = @transform_3, window_bounds = array<i64: 16, 4>}, {transform_indices = @transform_4, window_bounds = array<i64: 8, 2>}]} {
    %c0 = arith.constant 0 : index
    %c0_0 = arith.constant 0 : index
    %0 = vector.load %arg1[%c0, %c0_0] : memref<8x16xf32, #tpu.memory_space<vmem>>, vector<8x16xf32>
    %c0_1 = arith.constant 0 : index
    %c0_2 = arith.constant 0 : index
    %1 = vector.load %arg2[%c0_1, %c0_2] : memref<8x16xf32, #tpu.memory_space<vmem>>, vector<8x16xf32>
    %c0_3 = arith.constant 0 : index
    %c0_4 = arith.constant 0 : index
    %2 = vector.load %arg3[%c0_3, %c0_4] : memref<8x4xf32, #tpu.memory_space<vmem>>, vector<8x4xf32>
    %c0_5 = arith.constant 0 : index
    %c0_6 = arith.constant 0 : index
    %3 = vector.load %arg4[%c0_5, %c0_6] : memref<16x4xf32, #tpu.memory_space<vmem>>, vector<16x4xf32>
    %cst = arith.constant dense<0.000000e+00> : vector<8xf32>
    %4 = vector.multi_reduction <add>, %0, %cst [1] : vector<8x16xf32> to vector<8xf32>
    %5 = vector.shape_cast %4 : vector<8xf32> to vector<8x1xf32>
    %cst_7 = arith.constant 1.600000e+01 : f32
    %6 = vector.broadcast %cst_7 : f32 to vector<8x1xf32>
    %7 = arith.divf %5, %6 : vector<8x1xf32>
    %8 = vector.broadcast %7 : vector<8x1xf32> to vector<8x16xf32>
    %9 = arith.subf %0, %8 : vector<8x16xf32>
    %cst_8 = arith.constant dense<0.000000e+00> : vector<8xf32>
    %10 = vector.multi_reduction <add>, %1, %cst_8 [1] : vector<8x16xf32> to vector<8xf32>
    %11 = vector.shape_cast %10 : vector<8xf32> to vector<8x1xf32>
    %cst_9 = arith.constant 1.600000e+01 : f32
    %12 = vector.broadcast %cst_9 : f32 to vector<8x1xf32>
    %13 = arith.divf %11, %12 : vector<8x1xf32>
    %14 = vector.broadcast %13 : vector<8x1xf32> to vector<8x16xf32>
    %15 = arith.subf %1, %14 : vector<8x16xf32>
    %16 = arith.mulf %9, %9 : vector<8x16xf32>
    %cst_10 = arith.constant dense<0.000000e+00> : vector<8xf32>
    %17 = vector.multi_reduction <add>, %16, %cst_10 [1] : vector<8x16xf32> to vector<8xf32>
    %18 = vector.shape_cast %17 : vector<8xf32> to vector<8x1xf32>
    %19 = arith.mulf %15, %15 : vector<8x16xf32>
    %cst_11 = arith.constant dense<0.000000e+00> : vector<8xf32>
    %20 = vector.multi_reduction <add>, %19, %cst_11 [1] : vector<8x16xf32> to vector<8xf32>
    %21 = vector.shape_cast %20 : vector<8xf32> to vector<8x1xf32>
    %22 = arith.mulf %9, %15 : vector<8x16xf32>
    %cst_12 = arith.constant dense<0.000000e+00> : vector<8xf32>
    %23 = vector.multi_reduction <add>, %22, %cst_12 [1] : vector<8x16xf32> to vector<8xf32>
    %24 = vector.shape_cast %23 : vector<8xf32> to vector<8x1xf32>
    %25 = arith.mulf %24, %24 : vector<8x1xf32>
    %26 = arith.mulf %18, %21 : vector<8x1xf32>
    %27 = tpu.reciprocal %26 : vector<8x1xf32> -> vector<8x1xf32>
    %28 = arith.mulf %25, %27 : vector<8x1xf32>
    %29 = vector.extract_strided_slice %3 {offsets = [0, 0], sizes = [1, 4], strides = [1, 1]} : vector<16x4xf32> to vector<1x4xf32>
    %30 = vector.extract_strided_slice %3 {offsets = [1, 0], sizes = [4, 4], strides = [1, 1]} : vector<16x4xf32> to vector<4x4xf32>
    %31 = vector.extract_strided_slice %3 {offsets = [5, 0], sizes = [1, 4], strides = [1, 1]} : vector<16x4xf32> to vector<1x4xf32>
    %32 = vector.extract_strided_slice %3 {offsets = [6, 0], sizes = [4, 4], strides = [1, 1]} : vector<16x4xf32> to vector<4x4xf32>
    %33 = vector.extract_strided_slice %3 {offsets = [10, 0], sizes = [1, 4], strides = [1, 1]} : vector<16x4xf32> to vector<1x4xf32>
    %34 = vector.broadcast %28 : vector<8x1xf32> to vector<8x4xf32>
    %35 = vector.broadcast %29 : vector<1x4xf32> to vector<8x4xf32>
    %36 = arith.mulf %34, %35 : vector<8x4xf32>
    %cst_13 = arith.constant dense<0.000000e+00> : vector<8x4xf32>
    %37 = tpu.matmul %2, %30, %cst_13 {dimension_numbers = #tpu.dot_dimension_numbers<[1], [0], [0], [1], [0, 0, 1, 1], [], []>} : vector<8x4xf32>, vector<4x4xf32>, vector<8x4xf32> -> vector<8x4xf32>
    %38 = arith.addf %36, %37 : vector<8x4xf32>
    %39 = vector.broadcast %31 : vector<1x4xf32> to vector<8x4xf32>
    %40 = arith.addf %38, %39 : vector<8x4xf32>
    %cst_14 = arith.constant 0.000000e+00 : f32
    %41 = vector.broadcast %cst_14 : f32 to vector<8x4xf32>
    %42 = arith.maximumf %40, %41 : vector<8x4xf32>
    %cst_15 = arith.constant dense<0.000000e+00> : vector<8x4xf32>
    %43 = tpu.matmul %42, %32, %cst_15 {dimension_numbers = #tpu.dot_dimension_numbers<[1], [0], [0], [1], [0, 0, 1, 1], [], []>} : vector<8x4xf32>, vector<4x4xf32>, vector<8x4xf32> -> vector<8x4xf32>
    %44 = vector.broadcast %33 : vector<1x4xf32> to vector<8x4xf32>
    %45 = arith.addf %43, %44 : vector<8x4xf32>
    %46 = vector.extract_strided_slice %45 {offsets = [0, 0], sizes = [8, 2], strides = [1, 1]} : vector<8x4xf32> to vector<8x2xf32>
    %c0_16 = arith.constant 0 : index
    %c0_17 = arith.constant 0 : index
    %47 = vector.load %arg5[%c0_16, %c0_17] : memref<8x2xf32, #tpu.memory_space<vmem>>, vector<8x2xf32>
    tpu.vector_store %arg5[%c0_16, %c0_17], %46 {strides = array<i32>} : memref<8x2xf32, #tpu.memory_space<vmem>>, vector<8x2xf32>,
    return
  }
  func.func @transform_0(%arg0: i32) -> (i32, i32) {
    %c0_i32 = arith.constant 0 : i32
    %c0_i32_0 = arith.constant 0 : i32
    return %arg0, %c0_i32 : i32, i32
  }
  func.func @transform_1(%arg0: i32) -> (i32, i32) {
    %c0_i32 = arith.constant 0 : i32
    %c0_i32_0 = arith.constant 0 : i32
    return %arg0, %c0_i32 : i32, i32
  }
  func.func @transform_2(%arg0: i32) -> (i32, i32) {
    %c0_i32 = arith.constant 0 : i32
    %c0_i32_0 = arith.constant 0 : i32
    return %arg0, %c0_i32 : i32, i32
  }
  func.func @transform_3(%arg0: i32) -> (i32, i32) {
    %c0_i32 = arith.constant 0 : i32
    %c0_i32_0 = arith.constant 0 : i32
    %c0_i32_1 = arith.constant 0 : i32
    return %c0_i32, %c0_i32_0 : i32, i32
  }
  func.func @transform_4(%arg0: i32) -> (i32, i32) {
    %c0_i32 = arith.constant 0 : i32
    %c0_i32_0 = arith.constant 0 : i32
    return %arg0, %c0_i32 : i32, i32
  }
}

</mosaic_0001>

<llo_original>
// kernel: tpu_custom_call.1
$region0: #{tpu_custom_call.1}
  #allocation0 [shape = 'u32[]', space=smem, size = 0x4, offset = 0x4, fixed_abs, tag = 'smem constant byte address 0x4 - core index']
  #allocation1 [shape = 'u32[144,128]{1,0:T(1,128)}', space=vmem, size = 0x12000, scoped, tag = 'internal scratch']
  %s0 = inlined_call_operand.hbm [shape: f32[13,16], index: 0, kind: input, shape index: {}]
  %s1 = inlined_call_operand.hbm [shape: f32[13,16], index: 1, kind: input, shape index: {}]
  %s2 = inlined_call_operand.hbm [shape: f32[13,4], index: 2, kind: input, shape index: {}]
  %s3 = inlined_call_operand.hbm [shape: f32[16,4], index: 3, kind: input, shape index: {}]
  %s4 = inlined_call_operand.hbm [shape: f32[13,2], index: 4, kind: output, shape index: {}]
  %s5 = sld [smem:[#allocation0]]
  $region65: #{tpu_custom_call.1} parent=0
    _
  %s7 = ssub.s32 1, %s5
  %s8 = scalar_select 0, %s7, %s5
  $region1: #{tpu_custom_call.1} parent=0
    #allocation2 [shape = 'u8[8192]{0}', space=vmem, size = 0x2000, scoped, tag = 'input window, operand 0']
    #allocation3 [shape = 's32[2]{0}', space=sflag, size = 0x8, scoped, tag = 'scoped memory for tpu_custom_call.1']
    #allocation4 [shape = 's32[2]{0}', space=sflag, size = 0x8, scoped, tag = 'scoped memory for tpu_custom_call.1']
    #allocation5 [shape = 'u8[8192]{0}', space=vmem, size = 0x2000, scoped, tag = 'input window, operand 1']
    #allocation6 [shape = 's32[2]{0}', space=sflag, size = 0x8, scoped, tag = 'scoped memory for tpu_custom_call.1']
    #allocation7 [shape = 'u8[8192]{0}', space=vmem, size = 0x2000, scoped, tag = 'input window, operand 2']
    #allocation8 [shape = 'u8[8192]{0}', space=vmem, size = 0x2000, scoped, tag = 'input window, operand 3, single buffered']
    #allocation9 [shape = 's32[1]{0}', space=sflag, size = 0x4, scoped, tag = 'scoped memory for tpu_custom_call.1']
    #allocation10 [shape = 'u8[8192]{0}', space=vmem, size = 0x2000, scoped, tag = 'output window, operand 0']
    %9 = vsyncpa [#allocation3], 0
    %s10 = scalar_lea.sflag [#allocation3], 1
    %11 = vsyncpa %s10, 0
    %12 = vsyncpa [#allocation6], 0
    %s13 = scalar_lea.sflag [#allocation6], 1
    %14 = vsyncpa %s13, 0
    %15 = vsyncpa [#allocation9], 0
    %16 = vsyncpa [#allocation4], 0
    %s17 = scalar_lea.sflag [#allocation4], 1
    %18 = vsyncpa %s17, 0
    loop: start=0, step=1, limit=4
    $region2: #{tpu_custom_call.1} parent=1 // loop_pre_header
      _
    $region3: #{tpu_custom_call.1} parent=1 // loop_header
      %s20 = sphi 0, %s24
      %p21 = scmp.ge.s32.totalorder %s20, 4
      %s30 = sphi 0, %s32
      %s33 = sphi 0, %s30
      %s34 = sphi 0, %s33
      %s50 = sphi 0, %s34
      %s56 = sphi 0, %s58
      %s59 = sphi 0, %s56
      %s60 = sphi 0, %s59
      %s76 = sphi 0, %s60
      %s82 = sphi 0, %s84
      %s85 = sphi 0, %s82
      %s86 = sphi 0, %s85
      %s102 = sphi 0, %s86
      %s106 = sphi 0, %s106
      %s108 = sphi 0, %s106
      %s109 = sphi 0, %s108
      %s123 = sphi 0, %s109
      %s129 = sphi 0, %s131
      %s132 = sphi 0, %s129
      %s133 = sphi 0, %s132
      %s149 = sphi 0, %s133
    $region4: #{tpu_custom_call.1} parent=1 // loop_header_branch
      %23 = sbr.rel (%p21) target = $region8
    $region5: #{tpu_custom_call.1} parent=1 // loop_body
      %s25 = ssub.s32 %s20, 1
      %s26 = ssub.s32 %s20, 2
      %s27 = sadd.s32 %s20, 1
      %s28 = ssub.s32 %s20, %s27
      %p29 = scmp.eq.s32.totalorder %s28, 0
      %s31 = sadd.s32 %s30, 1
      %s32 = scalar_select %p29, %s30, %s31
      %p35 = pneg %p29
      %p36 = scmp.eq.s32.totalorder %s20, 1
      %p37 = por %p35, %p36
      %p38 = scmp.ne.s32.totalorder %s30, %s33
      %p39 = scmp.eq.s32.totalorder %s20, 0
      %p40 = por %p38, %p39
      %p41 = scmp.ne.s32.totalorder %s30, %s33
      %p42 = scmp.eq.s32.totalorder %s25, 1
      %p43 = por %p41, %p42
      %p44 = scmp.ne.s32.totalorder %s33, %s34
      %p45 = scmp.eq.s32.totalorder %s25, 0
      %p46 = por %p44, %p45
      %p47 = scmp.ne.s32.totalorder %s33, %s34
      %p48 = scmp.eq.s32.totalorder %s26, 1
      %p49 = por %p47, %p48
      %p51 = scmp.ne.s32.totalorder %s34, %s50
      %p52 = scmp.eq.s32.totalorder %s26, 0
      %p53 = por %p51, %p52
      %s54 = ssub.s32 %s20, %s27
      %p55 = scmp.eq.s32.totalorder %s54, 0
      %s57 = sadd.s32 %s56, 1
      %s58 = scalar_select %p55, %s56, %s57
      %p61 = pneg %p55
      %p62 = scmp.eq.s32.totalorder %s20, 1
      %p63 = por %p61, %p62
      %p64 = scmp.ne.s32.totalorder %s56, %s59
      %p65 = scmp.eq.s32.totalorder %s20, 0
      %p66 = por %p64, %p65
      %p67 = scmp.ne.s32.totalorder %s56, %s59
      %p68 = scmp.eq.s32.totalorder %s25, 1
      %p69 = por %p67, %p68
      %p70 = scmp.ne.s32.totalorder %s59, %s60
      %p71 = scmp.eq.s32.totalorder %s25, 0
      %p72 = por %p70, %p71
      %p73 = scmp.ne.s32.totalorder %s59, %s60
      %p74 = scmp.eq.s32.totalorder %s26, 1
      %p75 = por %p73, %p74
      %p77 = scmp.ne.s32.totalorder %s60, %s76
      %p78 = scmp.eq.s32.totalorder %s26, 0
      %p79 = por %p77, %p78
      %s80 = ssub.s32 %s20, %s27
      %p81 = scmp.eq.s32.totalorder %s80, 0
      %s83 = sadd.s32 %s82, 1
      %s84 = scalar_select %p81, %s82, %s83
      %p87 = pneg %p81
      %p88 = scmp.eq.s32.totalorder %s20, 1
      %p89 = por %p87, %p88
      %p90 = scmp.ne.s32.totalorder %s82, %s85
      %p91 = scmp.eq.s32.totalorder %s20, 0
      %p92 = por %p90, %p91
      %p93 = scmp.ne.s32.totalorder %s82, %s85
      %p94 = scmp.eq.s32.totalorder %s25, 1
      %p95 = por %p93, %p94
      %p96 = scmp.ne.s32.totalorder %s85, %s86
      %p97 = scmp.eq.s32.totalorder %s25, 0
      %p98 = por %p96, %p97
      %p99 = scmp.ne.s32.totalorder %s85, %s86
      %p100 = scmp.eq.s32.totalorder %s26, 1
      %p101 = por %p99, %p100
      %p103 = scmp.ne.s32.totalorder %s86, %s102
      %p104 = scmp.eq.s32.totalorder %s26, 0
      %p105 = por %p103, %p104
      %s107 = sadd.s32 %s106, 1
      %p110 = scmp.eq.s32.totalorder %s20, 1
      %p111 = scmp.ne.s32.totalorder %s106, %s108
      %p112 = scmp.eq.s32.totalorder %s20, 0
      %p113 = por %p111, %p112
      %p114 = scmp.ne.s32.totalorder %s106, %s108
      %p115 = scmp.eq.s32.totalorder %s25, 1
      %p116 = por %p114, %p115
      %p117 = scmp.ne.s32.totalorder %s108, %s109
      %p118 = scmp.eq.s32.totalorder %s25, 0
      %p119 = por %p117, %p118
      %p120 = scmp.ne.s32.totalorder %s108, %s109
      %p121 = scmp.eq.s32.totalorder %s26, 1
      %p122 = por %p120, %p121
      %p124 = scmp.ne.s32.totalorder %s109, %s123
      %p125 = scmp.eq.s32.totalorder %s26, 0
      %p126 = por %p124, %p125
      %s127 = ssub.s32 %s20, %s27
      %p128 = scmp.eq.s32.totalorder %s127, 0
      %s130 = sadd.s32 %s129, 1
      %s131 = scalar_select %p128, %s129, %s130
      %p134 = pneg %p128
      %p135 = scmp.eq.s32.totalorder %s20, 1
      %p136 = por %p134, %p135
      %p137 = scmp.ne.s32.totalorder %s129, %s132
      %p138 = scmp.eq.s32.totalorder %s20, 0
      %p139 = por %p137, %p138
      %p140 = scmp.ne.s32.totalorder %s129, %s132
      %p141 = scmp.eq.s32.totalorder %s25, 1
      %p142 = por %p140, %p141
      %p143 = scmp.ne.s32.totalorder %s132, %s133
      %p144 = scmp.eq.s32.totalorder %s25, 0
      %p145 = por %p143, %p144
      %p146 = scmp.ne.s32.totalorder %s132, %s133
      %p147 = scmp.eq.s32.totalorder %s26, 1
      %p148 = por %p146, %p147
      %p150 = scmp.ne.s32.totalorder %s133, %s149
      %p151 = scmp.eq.s32.totalorder %s26, 0
      %p152 = por %p150, %p151
      %p153 = scmp.le.s32.totalorder 1, %s20
      %p154 = scmp.lt.s32.totalorder %s20, 3
      %p155 = pnand %p153, %p154
      %p156 = pneg %p155
      // Predicated region
      $region9: #{tpu_custom_call.1} parent=5 // pred_check
        _
      $region10: #{tpu_custom_call.1} parent=5 // pred_check_branch
        %158 = sbr.rel (%p155) target = $region12
      $region11: #{tpu_custom_call.1} parent=5 // pred_region
        %s159 = ssub.s32 %s20, 1
        // Predicated region
        $region13: #{tpu_custom_call.1} parent=11 // pred_check
          %p160 = pneg %p119
        $region14: #{tpu_custom_call.1} parent=11 // pred_check_branch
          %162 = sbr.rel (%p160) target = $region16
        $region15: #{tpu_custom_call.1} parent=11 // pred_region
          %s164 = ssub.s32 256, 256
          %165 = vsyncadd [#allocation9], %s164
          %s166 = sshll.u32 [#allocation8], 4
          %s167 = int_to_ptr.vmem [resolvable:$true] %s166
          %172 = dma.hbm_to_vmem [thread:$0]  %s3, 256, %s167, [#allocation9], 128, 128, 8
        $region16: #{tpu_custom_call.1} parent=11 // pred_fallthru
          _
      $region12: #{tpu_custom_call.1} parent=5 // pred_fallthru
        _
      %p173 = scmp.lt.s32.totalorder %s20, 2
      // Predicated region
      $region17: #{tpu_custom_call.1} parent=5 // pred_check
        %p174 = pneg %p173
      $region18: #{tpu_custom_call.1} parent=5 // pred_check_branch
        %176 = sbr.rel (%p174) target = $region20
      $region19: #{tpu_custom_call.1} parent=5 // pred_region
        // Predicated region
        $region21: #{tpu_custom_call.1} parent=19 // pred_check
          %p177 = pneg %p40
        $region22: #{tpu_custom_call.1} parent=19 // pred_check_branch
          %179 = sbr.rel (%p177) target = $region24
        $region23: #{tpu_custom_call.1} parent=19 // pred_region
          %s180 = sand.u32 %s30, 1
          %s181 = scalar_lea.sflag [#allocation3], %s180
          %s182 = sand.u32 %s30, 1
          %s183 = smul.addr %s182, 8
          %s184 = scalar_lea.vmem [#allocation2], %s183
          %s186 = ssub.s32 128, 128
          %187 = vsyncadd %s181, %s186
          %s188 = smul.addr %s20, 128
          %s189 = scalar_lea.hbm %s0, %s188
          %s191 = sshll.u32 %s184, 4
          %s192 = int_to_ptr.vmem [resolvable:$true] %s191
          %194 = dma.hbm_to_vmem [thread:$0]  %s189, 128, %s192, %s181
        $region24: #{tpu_custom_call.1} parent=19 // pred_fallthru
          _
        // Predicated region
        $region25: #{tpu_custom_call.1} parent=19 // pred_check
          %p195 = pneg %p66
        $region26: #{tpu_custom_call.1} parent=19 // pred_check_branch
          %197 = sbr.rel (%p195) target = $region28
        $region27: #{tpu_custom_call.1} parent=19 // pred_region
          %s198 = sand.u32 %s20, 1
          %s199 = scalar_lea.sflag [#allocation6], %s198
          %s200 = sand.u32 %s56, 1
          %s201 = smul.addr %s200, 8
          %s202 = scalar_lea.vmem [#allocation5], %s201
          %s204 = ssub.s32 128, 128
          %205 = vsyncadd %s199, %s204
          %s206 = smul.addr %s20, 128
          %s207 = scalar_lea.hbm %s1, %s206
          %s209 = sshll.u32 %s202, 4
          %s210 = int_to_ptr.vmem [resolvable:$true] %s209
          %212 = dma.hbm_to_vmem [thread:$0]  %s207, 128, %s210, %s199
        $region28: #{tpu_custom_call.1} parent=19 // pred_fallthru
          _
        // Predicated region
        $region29: #{tpu_custom_call.1} parent=19 // pred_check
          %p213 = pneg %p92
        $region30: #{tpu_custom_call.1} parent=19 // pred_check_branch
          %215 = sbr.rel (%p213) target = $region32
        $region31: #{tpu_custom_call.1} parent=19 // pred_region
          %s216 = sand.u32 %s20, 1
          %s217 = scalar_lea.sflag [#allocation6], %s216
          %s218 = sand.u32 %s82, 1
          %s219 = smul.addr %s218, 8
          %s220 = scalar_lea.vmem [#allocation7], %s219
          %s222 = ssub.s32 128, 128
          %223 = vsyncadd %s217, %s222
          %s224 = smul.addr %s20, 128
          %s225 = scalar_lea.hbm %s2, %s224
          %s227 = sshll.u32 %s220, 4
          %s228 = int_to_ptr.vmem [resolvable:$true] %s227
          %230 = dma.hbm_to_vmem [thread:$0]  %s225, 128, %s228, %s217
        $region32: #{tpu_custom_call.1} parent=19 // pred_fallthru
          _
      $region20: #{tpu_custom_call.1} parent=5 // pred_fallthru
        _
      %p231 = scmp.le.s32.totalorder 1, %s20
      %p232 = scmp.lt.s32.totalorder %s20, 3
      %p233 = pnand %p231, %p232
      %p234 = pneg %p233
      // Predicated region
      $region33: #{tpu_custom_call.1} parent=5 // pred_check
        _
      $region34: #{tpu_custom_call.1} parent=5 // pred_check_branch
        %236 = sbr.rel (%p233) target = $region36
      $region35: #{tpu_custom_call.1} parent=5 // pred_region
        %s237 = ssub.s32 %s20, 1
        %s238 = sand.u32 %s33, 1
        %s239 = scalar_lea.sflag [#allocation3], %s238
        %s240 = sand.u32 %s33, 1
        %s241 = smul.addr %s240, 8
        %s242 = scalar_lea.vmem [#allocation2], %s241
        // Predicated region
        $region37: #{tpu_custom_call.1} parent=35 // pred_check
          %p243 = pneg %p46
        $region38: #{tpu_custom_call.1} parent=35 // pred_check_branch
          %245 = sbr.rel (%p243) target = $region40
        $region39: #{tpu_custom_call.1} parent=35 // pred_region
          %246 = dma.done %s239, 128
        $region40: #{tpu_custom_call.1} parent=35 // pred_fallthru
          _
        %s247 = sand.u32 %s25, 1
        %s248 = scalar_lea.sflag [#allocation6], %s247
        %s249 = sand.u32 %s59, 1
        %s250 = smul.addr %s249, 8
        %s251 = scalar_lea.vmem [#allocation5], %s250
        // Predicated region
        $region41: #{tpu_custom_call.1} parent=35 // pred_check
          %p252 = pneg %p72
        $region42: #{tpu_custom_call.1} parent=35 // pred_check_branch
          %254 = sbr.rel (%p252) target = $region44
        $region43: #{tpu_custom_call.1} parent=35 // pred_region
          %255 = dma.done %s248, 128
        $region44: #{tpu_custom_call.1} parent=35 // pred_fallthru
          _
        %s256 = sand.u32 %s25, 1
        %s257 = scalar_lea.sflag [#allocation6], %s256
        %s258 = sand.u32 %s85, 1
        %s259 = smul.addr %s258, 8
        %s260 = scalar_lea.vmem [#allocation7], %s259
        // Predicated region
        $region45: #{tpu_custom_call.1} parent=35 // pred_check
          %p261 = pneg %p98
        $region46: #{tpu_custom_call.1} parent=35 // pred_check_branch
          %263 = sbr.rel (%p261) target = $region48
        $region47: #{tpu_custom_call.1} parent=35 // pred_region
          %264 = dma.done %s257, 128
        $region48: #{tpu_custom_call.1} parent=35 // pred_fallthru
          _
        // Predicated region
        $region49: #{tpu_custom_call.1} parent=35 // pred_check
          %p265 = pneg %p119
        $region50: #{tpu_custom_call.1} parent=35 // pred_check_branch
          %267 = sbr.rel (%p265) target = $region52
        $region51: #{tpu_custom_call.1} parent=35 // pred_region
          %268 = dma.done [#allocation9], 256
        $region52: #{tpu_custom_call.1} parent=35 // pred_fallthru
          _
        %s269 = sand.u32 %s33, 1
        %s270 = scalar_lea.sflag [#allocation3], %s269
        %s271 = sand.u32 %s33, 1
        %s272 = smul.addr %s271, 8
        %s273 = scalar_lea.vmem [#allocation2], %s272
        %p274 = pneg %p46
        %p275 = pneg %p43
        %s276 = sand.u32 %s25, 1
        %s277 = scalar_lea.sflag [#allocation6], %s276
        %s278 = sand.u32 %s59, 1
        %s279 = smul.addr %s278, 8
        %s280 = scalar_lea.vmem [#allocation5], %s279
        %p281 = pneg %p72
        %p282 = pneg %p69
        %s283 = sand.u32 %s25, 1
        %s284 = scalar_lea.sflag [#allocation6], %s283
        %s285 = sand.u32 %s85, 1
        %s286 = smul.addr %s285, 8
        %s287 = scalar_lea.vmem [#allocation7], %s286
        %p288 = pneg %p98
        %p289 = pneg %p95
        %p290 = pneg %p119
        %p291 = pneg %p116
        %p292 = pneg %p145
        %p293 = pneg %p142
        %s294 = sand.u32 %s132, 1
        %s295 = scalar_lea.sflag [#allocation4], %s294
        %s296 = sand.u32 %s132, 1
        %s297 = smul.addr %s296, 8
        %s298 = scalar_lea.vmem [#allocation10], %s297
        %v299 = vld [vmem:[%s242] sm:$0xff]
        %v300 = vld [vmem:[%s251] sm:$0xff]
        %v301 = vld [vmem:[%s260] sm:$0xff]
        %v302 = vld [vmem:[#allocation8] sm:$0xff]
        %v303 = vld [vmem:[#allocation8 + $0x8] sm:$0xff]
        %vm304 = vcmask 130048
        %v305 = vsel %vm304, %v299, 0.0
        %306 = vadd.xlane.f32.xlu0 %v305
        %v307 = vpop.xlane.xlu0 %306
        %v308 = vrcp.pop 16.0
        %v309 = vmul.f32 %v307, %v308
        %v310 = vsub.f32 %v299, %v309
        %v311 = vsel %vm304, %v300, 0.0
        %312 = vadd.xlane.f32.xlu0 %v311
        %v313 = vpop.xlane.xlu0 %312
        %v314 = vmul.f32 %v313, %v308
        %v315 = vsub.f32 %v300, %v314
        %v316 = vmul.f32 %v310, %v310
        %v317 = vsel %vm304, %v316, 0.0
        %318 = vadd.xlane.f32.xlu0 %v317
        %v319 = vpop.xlane.xlu0 %318
        %v320 = vmul.f32 %v315, %v315
        %v321 = vsel %vm304, %v320, 0.0
        %322 = vadd.xlane.f32.xlu0 %v321
        %v323 = vpop.xlane.xlu0 %322
        %v324 = vmul.f32 %v310, %v315
        %v325 = vsel %vm304, %v324, 0.0
        %326 = vadd.xlane.f32.xlu0 %v325
        %v327 = vpop.xlane.xlu0 %326
        %v328 = vmul.f32 %v327, %v327
        %v329 = vmul.f32 %v319, %v323
        %v330 = vrcp.pop %v329
        %v331 = vmul.f32 %v328, %v330
        %v332 = vlaneseq
        %v333 = vshrl.u32 %v332, 7
        %v334 = vsub.s32 0, %v333
        %v335 = vrot.slane %v302, %v334
        %v336 = vmul.f32 %v331, %v335
        %v338 = vrot.slane %v302, 1
        %vm339 = vcmask 31744
        %v341 = vsel %vm339, %v301, 0
        %vm343 = vcmask 1043456
        %v344 = vsel %vm343, %v338, 0
        %346 = vmatprep.subr.mxu0 0.0
        %347 = vmatpush1.msra.mxu0 %v344
        %348 = vmatprep.subr.mxu0 0.0
        %349 = vmatpush1.msra.mxu0 0.0
        %350 = vmatprep.subr.mxu0 0.0
        %351 = vmatpush1.msra.mxu0 0.0
        %352 = vmatprep.subr.mxu0 0.0
        %353 = vmatpush1.msra.mxu0 0.0
        %354 = vmatprep.subr.mxu0 0.0
        %355 = vmatpush1.msra.mxu0 0.0
        %356 = vmatprep.subr.mxu0 0.0
        %357 = vmatpush1.msra.mxu0 0.0
        %358 = vmatprep.subr.mxu0 0.0
        %359 = vmatpush1.msra.mxu0 0.0
        %360 = vmatprep.subr.mxu0 0.0
        %361 = vmatpush1.msra.mxu0 0.0
        %362 = vmatprep.subr.mxu0 0.0
        %363 = vmatpush1.msra.mxu0 0.0
        %364 = vmatprep.subr.mxu0 0.0
        %365 = vmatpush1.msra.mxu0 0.0
        %366 = vmatprep.subr.mxu0 0.0
        %367 = vmatpush1.msra.mxu0 0.0
        %368 = vmatprep.subr.mxu0 0.0
        %369 = vmatpush1.msra.mxu0 0.0
        %370 = vmatprep.subr.mxu0 0.0
        %371 = vmatpush1.msra.mxu0 0.0
        %372 = vmatprep.subr.mxu0 0.0
        %373 = vmatpush1.msra.mxu0 0.0
        %374 = vmatprep.subr.mxu0 0.0
        %375 = vmatpush1.msra.mxu0 0.0
        %376 = vmatprep.subr.mxu0 0.0
        %377 = vmatpush1.msra.mxu0 0.0
        %378 = vmatprep.subr.mxu0 0.0
        %379 = vmatpush1.msra.mxu0 0.0
        %380 = vmatprep.subr.mxu0 0.0
        %381 = vmatpush1.msra.mxu0 0.0
        %382 = vmatprep.subr.mxu0 0.0
        %383 = vmatpush1.msra.mxu0 0.0
        %384 = vmatprep.subr.mxu0 0.0
        %385 = vmatpush1.msra.mxu0 0.0
        %386 = vmatprep.subr.mxu0 0.0
        %387 = vmatpush1.msra.mxu0 0.0
        %388 = vmatprep.subr.mxu0 0.0
        %389 = vmatpush1.msra.mxu0 0.0
        %390 = vmatprep.subr.mxu0 0.0
        %391 = vmatpush1.msra.mxu0 0.0
        %392 = vmatprep.subr.mxu0 0.0
        %393 = vmatpush1.msra.mxu0 0.0
        %394 = vmatprep.subr.mxu0 0.0
        %395 = vmatpush1.msra.mxu0 0.0
        %396 = vmatprep.subr.mxu0 0.0
        %397 = vmatpush1.msra.mxu0 0.0
        %398 = vmatprep.subr.mxu0 0.0
        %399 = vmatpush1.msra.mxu0 0.0
        %400 = vmatprep.subr.mxu0 0.0
        %401 = vmatpush1.msra.mxu0 0.0
        %402 = vmatprep.subr.mxu0 0.0
        %403 = vmatpush1.msra.mxu0 0.0
        %404 = vmatprep.subr.mxu0 0.0
        %405 = vmatpush1.msra.mxu0 0.0
        %406 = vmatprep.subr.mxu0 0.0
        %407 = vmatpush1.msra.mxu0 0.0
        %408 = vmatprep.subr.mxu0 0.0
        %409 = vmatpush1.msra.mxu0 0.0
        %410 = vmatprep.mubr.f32.mxu0 0.0
        %411 = vmatmul.mubr.f32.gmra.mrb[0].mxu0 %v341
        %v412 = vpop.f32.mrb[0].mxu0
        %v413 = vadd.f32 0.0, %v412
        %v414 = vpop.f32.mrb[0].mxu0
        %415 = vdwg.mxu0
        %v416 = vadd.f32 %v336, %v413
        %v417 = vlaneseq
        %v418 = vshrl.u32 %v417, 7
        %v419 = vsub.s32 5, %v418
        %v420 = vrot.slane %v302, %v419
        %v421 = vadd.f32 %v416, %v420
        %v422 = vmax.f32 %v421, 0.0
        %v423 = vlaneseq
        %v424 = vshrl.u32 %v423, 7
        %v425 = vsub.s32 2, %v424
        %v426 = vrot.slane %v303, %v425
        %vm428 = vcmask 1041408
        %v429 = vrot.slane %v302, 6
        %v430 = vrot.slane %v303, 6
        %v431 = vsel %vm428, %v429, %v430
        %v433 = vsel %vm339, %v422, 0
        %v435 = vsel %vm343, %v431, 0
        %437 = vmatprep.subr.mxu0 0.0
        %438 = vmatpush1.msra.mxu0 %v435
        %439 = vmatprep.subr.mxu0 0.0
        %440 = vmatpush1.msra.mxu0 0.0
        %441 = vmatprep.subr.mxu0 0.0
        %442 = vmatpush1.msra.mxu0 0.0
        %443 = vmatprep.subr.mxu0 0.0
        %444 = vmatpush1.msra.mxu0 0.0
        %445 = vmatprep.subr.mxu0 0.0
        %446 = vmatpush1.msra.mxu0 0.0
        %447 = vmatprep.subr.mxu0 0.0
        %448 = vmatpush1.msra.mxu0 0.0
        %449 = vmatprep.subr.mxu0 0.0
        %450 = vmatpush1.msra.mxu0 0.0
        %451 = vmatprep.subr.mxu0 0.0
        %452 = vmatpush1.msra.mxu0 0.0
        %453 = vmatprep.subr.mxu0 0.0
        %454 = vmatpush1.msra.mxu0 0.0
        %455 = vmatprep.subr.mxu0 0.0
        %456 = vmatpush1.msra.mxu0 0.0
        %457 = vmatprep.subr.mxu0 0.0
        %458 = vmatpush1.msra.mxu0 0.0
        %459 = vmatprep.subr.mxu0 0.0
        %460 = vmatpush1.msra.mxu0 0.0
        %461 = vmatprep.subr.mxu0 0.0
        %462 = vmatpush1.msra.mxu0 0.0
        %463 = vmatprep.subr.mxu0 0.0
        %464 = vmatpush1.msra.mxu0 0.0
        %465 = vmatprep.subr.mxu0 0.0
        %466 = vmatpush1.msra.mxu0 0.0
        %467 = vmatprep.subr.mxu0 0.0
        %468 = vmatpush1.msra.mxu0 0.0
        %469 = vmatprep.subr.mxu0 0.0
        %470 = vmatpush1.msra.mxu0 0.0
        %471 = vmatprep.subr.mxu0 0.0
        %472 = vmatpush1.msra.mxu0 0.0
        %473 = vmatprep.subr.mxu0 0.0
        %474 = vmatpush1.msra.mxu0 0.0
        %475 = vmatprep.subr.mxu0 0.0
        %476 = vmatpush1.msra.mxu0 0.0
        %477 = vmatprep.subr.mxu0 0.0
        %478 = vmatpush1.msra.mxu0 0.0
        %479 = vmatprep.subr.mxu0 0.0
        %480 = vmatpush1.msra.mxu0 0.0
        %481 = vmatprep.subr.mxu0 0.0
        %482 = vmatpush1.msra.mxu0 0.0
        %483 = vmatprep.subr.mxu0 0.0
        %484 = vmatpush1.msra.mxu0 0.0
        %485 = vmatprep.subr.mxu0 0.0
        %486 = vmatpush1.msra.mxu0 0.0
        %487 = vmatprep.subr.mxu0 0.0
        %488 = vmatpush1.msra.mxu0 0.0
        %489 = vmatprep.subr.mxu0 0.0
        %490 = vmatpush1.msra.mxu0 0.0
        %491 = vmatprep.subr.mxu0 0.0
        %492 = vmatpush1.msra.mxu0 0.0
        %493 = vmatprep.subr.mxu0 0.0
        %494 = vmatpush1.msra.mxu0 0.0
        %495 = vmatprep.subr.mxu0 0.0
        %496 = vmatpush1.msra.mxu0 0.0
        %497 = vmatprep.subr.mxu0 0.0
        %498 = vmatpush1.msra.mxu0 0.0
        %499 = vmatprep.subr.mxu0 0.0
        %500 = vmatpush1.msra.mxu0 0.0
        %501 = vmatprep.mubr.f32.mxu0 0.0
        %502 = vmatmul.mubr.f32.gmra.mrb[0].mxu0 %v433
        %v503 = vpop.f32.mrb[0].mxu0
        %v504 = vadd.f32 %v426, %v503
        %v505 = vpop.f32.mrb[0].mxu0
        %506 = vdwg.mxu0
        %vm507 = vcmask 15360
        %508 = vst.msk [vmem:[%s298] sm:$0xff] %vm507, %v504
        %s509 = sand.u32 %s132, 1
        %s510 = scalar_lea.sflag [#allocation4], %s509
        %s511 = sand.u32 %s132, 1
        %s512 = smul.addr %s511, 8
        %s513 = scalar_lea.vmem [#allocation10], %s512
        // Predicated region
        $region53: #{tpu_custom_call.1} parent=35 // pred_check
          %p514 = pneg %p142
        $region54: #{tpu_custom_call.1} parent=35 // pred_check_branch
          %516 = sbr.rel (%p514) target = $region56
        $region55: #{tpu_custom_call.1} parent=35 // pred_region
          %s518 = ssub.s32 128, 128
          %519 = vsyncadd %s510, %s518
          %s520 = smul.addr %s25, 128
          %s521 = scalar_lea.hbm %s4, %s520
          %s523 = sshll.u32 %s513, 4
          %s524 = int_to_ptr.vmem [resolvable:$true] %s523
          %526 = dma.vmem_to_hbm [thread:$0]  %s524, 128, %s521, %s510
        $region56: #{tpu_custom_call.1} parent=35 // pred_fallthru
          _
      $region36: #{tpu_custom_call.1} parent=5 // pred_fallthru
        _
      %p527 = scmp.le.s32.totalorder 2, %s20
      // Predicated region
      $region57: #{tpu_custom_call.1} parent=5 // pred_check
        %p528 = pneg %p527
      $region58: #{tpu_custom_call.1} parent=5 // pred_check_branch
        %530 = sbr.rel (%p528) target = $region60
      $region59: #{tpu_custom_call.1} parent=5 // pred_region
        %s531 = ssub.s32 %s20, 2
        // Predicated region
        $region61: #{tpu_custom_call.1} parent=59 // pred_check
          %p532 = pneg %p148
        $region62: #{tpu_custom_call.1} parent=59 // pred_check_branch
          %534 = sbr.rel (%p532) target = $region64
        $region63: #{tpu_custom_call.1} parent=59 // pred_region
          %s535 = sand.u32 %s133, 1
          %s536 = scalar_lea.sflag [#allocation4], %s535
          %s537 = sand.u32 %s133, 1
          %s538 = smul.addr %s537, 8
          %s539 = scalar_lea.vmem [#allocation10], %s538
          %540 = dma.done %s536, 128
        $region64: #{tpu_custom_call.1} parent=59 // pred_fallthru
          _
      $region60: #{tpu_custom_call.1} parent=5 // pred_fallthru
        _
    $region6: #{tpu_custom_call.1} parent=1 // loop_footer
      %s24 = sadd.s32 1, %s20
    $region7: #{tpu_custom_call.1} parent=1 // loop_footer_branch
      %19 = sbr.rel target = $region3
    $region8: #{tpu_custom_call.1} parent=1 // loop_exit
      _
    %541 = vsyncpa [#allocation3], 1
    %s542 = scalar_lea.sflag [#allocation3], 1
    %543 = vsyncpa %s542, 1
    %544 = vsyncpa [#allocation6], 1
    %s545 = scalar_lea.sflag [#allocation6], 1
    %546 = vsyncpa %s545, 1
    %547 = vsyncpa [#allocation9], 1
    %548 = vsyncpa [#allocation4], 1
    %s549 = scalar_lea.sflag [#allocation4], 1
    %550 = vsyncpa %s549, 1

</llo_original>
